<compile_context>
chip_gen: v6e
topology: v6e:2x2x1
jax: 0.10.0
libtpu: 0.0.40
codegen_flags: <defaults>
</compile_context>

<pallas_src>
import jax
import jax.numpy as jnp
from jax import lax
from jax.experimental import pallas as pl
from jax.experimental.pallas import tpu as pltpu


def _round_up(x, m):
    return ((x + m - 1) // m) * m


def segment_sum_kernel(batch_ref, x_ref, o_ref, pooled_ref):
    # batch_ref: (1, TN) int32 segment ids (padded rows carry -1)
    # x_ref:     (TN, H) node-feature tile
    # o_ref:     (B, H)  per-split pooled output (leading split dim squeezed)
    # pooled_ref:(B, H)  f32 VMEM accumulator scratch
    k = pl.program_id(1)
    nk = pl.num_programs(1)
    B = pooled_ref.shape[0]

    @pl.when(k == 0)
    def _init():
        pooled_ref[...] = jnp.zeros_like(pooled_ref)

    seg = batch_ref[...]                                        # (1, TN)
    ids = lax.broadcasted_iota(jnp.int32, (B, seg.shape[1]), 0)  # (B, TN)
    onehot = (ids == seg).astype(x_ref.dtype)                    # exact 0/1 in any dtype

    # scatter_sum tile contribution: onehot @ x_tile  (MXU, f32 accumulate)
    pooled_ref[...] += jnp.dot(onehot, x_ref[...],
                               preferred_element_type=jnp.float32)

    @pl.when(k == nk - 1)
    def _finalize():
        o_ref[...] = pooled_ref[...].astype(o_ref.dtype)


def decoder_forward(x, batch, W, b, num_segments, *, tile_n=None,
                    vmem_limit_bytes=None):
    """x: [N, H], batch: [N] int, W: [H, H] (out,in), b: [H] -> [num_segments, H]."""
    N, H = x.shape
    B = int(num_segments)
    H_pad = _round_up(H, 128)
    B_pad = _round_up(B, 8)
    itemsize = x.dtype.itemsize

    # ---- tile size over N: function of H, B, and a conservative VMEM budget
    # (works within v5e's 16 MiB scoped default and v7x's 64 MiB physical VMEM;
    #  for small H this lands at 8-16K rows per tile).
    if tile_n is None:
        pipe_budget = 16 << 20
        # per node-row: double-buffered x row + id, plus one-hot/iota temporaries
        per_row = 2 * (H_pad * itemsize + 8 * 4) + B_pad * 12
        tile_n = (pipe_budget // per_row) // 128 * 128
        tile_n = max(128, min(16384, tile_n))
    tile_n = _round_up(int(tile_n), 128)
    tile_n = min(tile_n, _round_up(max(N, 1), 128))

    n_tiles = -(-max(N, 1) // tile_n)
    # Two-way split of the node stream for v7x's two TensorCores (leading
    # "parallel" grid axis).  Negligible cost on 1-TC v5e/v6e.
    num_splits = 2 if n_tiles >= 2 else 1
    k_per_split = -(-n_tiles // num_splits)
    N_pad = num_splits * k_per_split * tile_n

    # Pad N; padded rows get segment id -1 (dropped by the one-hot mask).
    batch_i32 = batch.astype(jnp.int32)
    if N_pad != N:
        x = jnp.pad(x, ((0, N_pad - N), (0, 0)))
        batch_i32 = jnp.pad(batch_i32, (0, N_pad - N), constant_values=-1)
    batch_row = batch_i32.reshape(1, N_pad)

    # ---- explicit VMEM accounting -> scoped limit (v5e's default is only 16 MiB)
    needed = (2 * tile_n * H_pad * itemsize      # x tile, double buffered
              + 2 * 8 * tile_n * 4               # id row, double buffered (8-sublane pad)
              + B_pad * H_pad * 4                # pooled f32 scratch
              + 2 * B_pad * H_pad * 4            # output block, double buffered
              + B_pad * tile_n * 8)              # iota / one-hot temporaries
    if vmem_limit_bytes is None:
        vmem_limit_bytes = min(max(32 << 20, int(needed * 5 // 4)), 48 << 20)

    grid = (num_splits, k_per_split)

    cost = pl.CostEstimate(
        flops=2 * B * N_pad * H,
        transcendentals=0,
        bytes_accessed=N_pad * (H * itemsize + 4) + num_splits * B * H * 4,
    )

    pooled_parts = pl.pallas_call(
        segment_sum_kernel,
        out_shape=jax.ShapeDtypeStruct((num_splits, B, H), jnp.float32),
        grid_spec=pltpu.PrefetchScalarGridSpec(
            num_scalar_prefetch=0,
            grid=grid,
            in_specs=[
                pl.BlockSpec((1, tile_n),
                             lambda c, k: (0, c * k_per_split + k)),   # batch ids tile
                pl.BlockSpec((tile_n, H),
                             lambda c, k: (c * k_per_split + k, 0)),   # x tile
            ],
            out_specs=pl.BlockSpec((None, B, H), lambda c, k: (c, 0, 0)),
            scratch_shapes=[pltpu.VMEM((B, H), jnp.float32)],           # pooled sums
        ),
        compiler_params=pltpu.CompilerParams(
            dimension_semantics=("parallel", "arbitrary"),
            vmem_limit_bytes=int(vmem_limit_bytes),
        ),
        cost_estimate=cost,
    )(batch_row, x)

    pooled = pooled_parts[0] if num_splits == 1 else jnp.sum(pooled_parts, axis=0)

    # Linear(H, H): pooled @ W.T + b.  Tiny (B x H x H) -> plain JAX, with W
    # pre-transposed (contiguous [in, out]) and kept in its native dtype.
    W_t = jnp.swapaxes(W, 0, 1)
    out = jnp.dot(pooled, W_t, preferred_element_type=jnp.float32)
    return out + b.astype(jnp.float32)


def _reference(x, batch, W, b, num_segments):
    pooled = jax.ops.segment_sum(x, batch, num_segments=num_segments)
    return pooled @ W.T + b


if __name__ == "__main__":
    key = jax.random.PRNGKey(0)
    k_x, k_w, k_b, k_x2, k_b2 = jax.random.split(key, 5)

    n_hidden = 32     # H
    num_nodes = 16    # N (total nodes across the batch of graphs)
    num_graphs = 4    # B

    x = jax.random.normal(k_x, (num_nodes, n_hidden), dtype=jnp.float32)
    # deterministic segment assignment: 4 nodes per graph
    batch = jnp.repeat(jnp.arange(num_graphs, dtype=jnp.int32),
                       num_nodes // num_graphs)

    # Deterministic parameter init for Linear(n_hidden, n_hidden) (PyTorch layout)
    W = jax.random.normal(k_w, (n_hidden, n_hidden), dtype=jnp.float32) * 0.1
    b = jax.random.normal(k_b, (n_hidden,), dtype=jnp.float32) * 0.1

    out = decoder_forward(x, batch, W, b, num_graphs)
    out = jax.block_until_ready(out)
    out_ref = _reference(x, batch, W, b, num_graphs)
    assert jnp.allclose(out, out_ref, atol=1e-5, rtol=1e-5), "mismatch vs reference (small)"

    # Second check: N not a multiple of the tile so the multi-step accumulator
    # path AND the two-way "parallel" split (grid (2, 2)) are exercised.
    num_nodes2 = 300
    x2 = jax.random.normal(k_x2, (num_nodes2, n_hidden), dtype=jnp.float32)
    batch2 = (jax.random.uniform(k_b2, (num_nodes2,)) * num_graphs).astype(jnp.int32)
    out2 = decoder_forward(x2, batch2, W, b, num_graphs, tile_n=128)
    out2 = jax.block_until_ready(out2)
    out2_ref = _reference(x2, batch2, W, b, num_graphs)
    assert jnp.allclose(out2, out2_ref, atol=1e-4, rtol=1e-4), "mismatch vs reference (tiled)"

    print("KERNEL_OK")
</pallas_src>

<mosaic_0001>
module attributes {stable_mosaic.version = 11 : i64} {
  func.func @segment_sum_kernel(%arg0: i32, %arg1: i32, %arg2: memref<1x128xi32, #tpu.memory_space<vmem>>, %arg3: memref<128x32xf32, #tpu.memory_space<vmem>>, %arg4: memref<1x4x32xf32, #tpu.memory_space<vmem>>, %arg5: memref<4x32xf32, #tpu.memory_space<vmem>>) attributes {dimension_semantics = [#tpu.dimension_semantics<parallel>, #tpu.dimension_semantics<arbitrary>], iteration_bounds = array<i64: 1, 1>, scalar_prefetch = 0 : i64, scratch_operands = 1 : i64, tpu.core_type = #tpu.core_type<tc>, window_params = [{transform_indices = @transform_0, window_bounds = array<i64: 1, 128>}, {transform_indices = @transform_1, window_bounds = array<i64: 128, 32>}, {transform_indices = @transform_2, window_bounds = array<i64: 1, 4, 32>}]} {
    %c0_i32 = arith.constant 0 : i32
    %0 = arith.cmpi eq, %arg1, %c0_i32 : i32
    %1 = arith.extui %0 : i1 to i32
    %c0_i32_0 = arith.constant 0 : i32
    %2 = arith.cmpi ne, %1, %c0_i32_0 : i32
    scf.if %2 {
      %cst_10 = arith.constant 0.000000e+00 : f32
      %17 = vector.broadcast %cst_10 : f32 to vector<4x32xf32>
      %c0_11 = arith.constant 0 : index
      %c0_12 = arith.constant 0 : index
      %18 = vector.load %arg5[%c0_11, %c0_12] : memref<4x32xf32, #tpu.memory_space<vmem>>, vector<4x32xf32>
      tpu.vector_store %arg5[%c0_11, %c0_12], %17 {strides = array<i32>} : memref<4x32xf32, #tpu.memory_space<vmem>>, vector<4x32xf32>,
    } else {
    }
    %c0 = arith.constant 0 : index
    %c0_1 = arith.constant 0 : index
    %3 = vector.load %arg2[%c0, %c0_1] : memref<1x128xi32, #tpu.memory_space<vmem>>, vector<1x128xi32>
    %4 = tpu.iota {dimensions = array<i32: 0>} : vector<4x128xi32>
    %5 = vector.broadcast %3 : vector<1x128xi32> to vector<4x128xi32>
    %6 = arith.cmpi eq, %4, %5 : vector<4x128xi32>
    %7 = arith.extui %6 : vector<4x128xi1> to vector<4x128xi32>
    %8 = arith.sitofp %7 : vector<4x128xi32> to vector<4x128xf32>
    %c0_2 = arith.constant 0 : index
    %c0_3 = arith.constant 0 : index
    %9 = vector.load %arg5[%c0_2, %c0_3] : memref<4x32xf32, #tpu.memory_space<vmem>>, vector<4x32xf32>
    %c0_4 = arith.constant 0 : index
    %c0_5 = arith.constant 0 : index
    %10 = vector.load %arg3[%c0_4, %c0_5] : memref<128x32xf32, #tpu.memory_space<vmem>>, vector<128x32xf32>
    %cst = arith.constant dense<0.000000e+00> : vector<4x32xf32>
    %11 = tpu.matmul %8, %10, %cst {dimension_numbers = #tpu.dot_dimension_numbers<[1], [0], [0], [1], [0, 0, 1, 1], [], []>} : vector<4x128xf32>, vector<128x32xf32>, vector<4x32xf32> -> vector<4x32xf32>
    %12 = arith.addf %9, %11 : vector<4x32xf32>
    %c0_6 = arith.constant 0 : index
    %c0_7 = arith.constant 0 : index
    %13 = vector.load %arg5[%c0_6, %c0_7] : memref<4x32xf32, #tpu.memory_space<vmem>>, vector<4x32xf32>
    tpu.vector_store %arg5[%c0_6, %c0_7], %12 {strides = array<i32>} : memref<4x32xf32, #tpu.memory_space<vmem>>, vector<4x32xf32>,
    %c0_i32_8 = arith.constant 0 : i32
    %14 = arith.cmpi eq, %arg1, %c0_i32_8 : i32
    %15 = arith.extui %14 : i1 to i32
    %c0_i32_9 = arith.constant 0 : i32
    %16 = arith.cmpi ne, %15, %c0_i32_9 : i32
    scf.if %16 {
      %c0_10 = arith.constant 0 : index
      %c0_11 = arith.constant 0 : index
      %17 = vector.load %arg5[%c0_10, %c0_11] : memref<4x32xf32, #tpu.memory_space<vmem>>, vector<4x32xf32>
      %c0_12 = arith.constant 0 : index
      %c0_13 = arith.constant 0 : index
      %c0_14 = arith.constant 0 : index
      %18 = vector.load %arg4[%c0_12, %c0_13, %c0_14] : memref<1x4x32xf32, #tpu.memory_space<vmem>>, vector<1x4x32xf32>
      %19 = vector.shape_cast %18 : vector<1x4x32xf32> to vector<4x32xf32>
      %20 = vector.shape_cast %17 : vector<4x32xf32> to vector<1x4x32xf32>
      tpu.vector_store %arg4[%c0_12, %c0_13, %c0_14], %20 {strides = array<i32>} : memref<1x4x32xf32, #tpu.memory_space<vmem>>, vector<1x4x32xf32>,
    } else {
    }
    return
  }
  func.func @transform_0(%arg0: i32, %arg1: i32) -> (i32, i32) {
    %c1_i32 = arith.constant 1 : i32
    %0 = arith.muli %arg0, %c1_i32 : i32
    %1 = arith.addi %0, %arg1 : i32
    %c0_i32 = arith.constant 0 : i32
    %c0_i32_0 = arith.constant 0 : i32
    return %c0_i32, %1 : i32, i32
  }
  func.func @transform_1(%arg0: i32, %arg1: i32) -> (i32, i32) {
    %c1_i32 = arith.constant 1 : i32
    %0 = arith.muli %arg0, %c1_i32 : i32
    %1 = arith.addi %0, %arg1 : i32
    %c0_i32 = arith.constant 0 : i32
    %c0_i32_0 = arith.constant 0 : i32
    return %1, %c0_i32 : i32, i32
  }
  func.func @transform_2(%arg0: i32, %arg1: i32) -> (i32, i32, i32) {
    %c0_i32 = arith.constant 0 : i32
    %c0_i32_0 = arith.constant 0 : i32
    %c0_i32_1 = arith.constant 0 : i32
    return %arg0, %c0_i32, %c0_i32_0 : i32, i32, i32
  }
}

</mosaic_0001>

<llo_original>
// kernel: tpu_custom_call.1
$region0: #{tpu_custom_call.1}
  #allocation0 [shape = 'u32[]', space=smem, size = 0x4, offset = 0x4, fixed_abs, tag = 'smem constant byte address 0x4 - core index']
  #allocation1 [shape = 'u32[144,128]{1,0:T(1,128)}', space=vmem, size = 0x12000, scoped, tag = 'internal scratch']
  #allocation2 [shape = 'f32[4,32]{1,0:T(4,128)}', space=vmem, size = 0x800, scoped, tag = 'scratch operand']
  %s0 = inlined_call_operand.vmem [shape: s32[1,128], index: 0, kind: input, shape index: {}]
  %s1 = inlined_call_operand.vmem [shape: f32[128,32], index: 1, kind: input, shape index: {}]
  %s2 = inlined_call_operand.hbm [shape: f32[1,4,32], index: 2, kind: output, shape index: {}]
  %s3 = sld [smem:[#allocation0]]
  $region26: #{tpu_custom_call.1} parent=0
    _
  %s5 = ssub.s32 1, %s3
  %s6 = scalar_select 0, %s5, %s3
  $region1: #{tpu_custom_call.1} parent=0
    #allocation3 [shape = 'u8[2048]{0}', space=vmem, size = 0x800, scoped, tag = 'output window, operand 0, single buffered']
    #allocation4 [shape = 's32[1]{0}', space=sflag, size = 0x4, scoped, tag = 'scoped memory for tpu_custom_call.1']
    %7 = vsyncpa [#allocation4], 0
    // Predicated region
    $region2: #{tpu_custom_call.1} parent=1 // pred_check
      _
    $region3: #{tpu_custom_call.1} parent=1 // pred_check_branch
      %9 = sbr.rel (0) target = $region5
    $region4: #{tpu_custom_call.1} parent=1 // pred_region
      %s10 = sadd.s32 0, 0
      %p11 = scmp.lt.s32.totalorder %s10, 0
      %s12 = scalar_select %p11, %s10, 0
      %s13 = scalar_lea.vmem %s0, %s12
      %s14 = sadd.s32 0, 0
    $region5: #{tpu_custom_call.1} parent=1 // pred_fallthru
      _
    // Predicated region
    $region6: #{tpu_custom_call.1} parent=1 // pred_check
      _
    $region7: #{tpu_custom_call.1} parent=1 // pred_check_branch
      %16 = sbr.rel (0) target = $region9
    $region8: #{tpu_custom_call.1} parent=1 // pred_region
      %s17 = sadd.s32 0, 0
      %s18 = smul.u32 16, %s17
      %p19 = scmp.lt.s32.totalorder %s18, 15
      %s20 = scalar_select %p19, %s18, 15
      %s21 = smul.addr %s20, 8
      %s22 = scalar_lea.vmem %s1, %s21
      %s23 = sadd.s32 0, 0
      %s24 = smul.u32 16, %s23
    $region9: #{tpu_custom_call.1} parent=1 // pred_fallthru
      _
    %s25 = sadd.s32 0, 0
    %p26 = scmp.lt.s32.totalorder %s25, 0
    %s27 = scalar_select %p26, %s25, 0
    %s28 = scalar_lea.vmem %s0, %s27
    %s29 = sadd.s32 0, 0
    %s30 = smul.u32 16, %s29
    %p31 = scmp.lt.s32.totalorder %s30, 15
    %s32 = scalar_select %p31, %s30, 15
    %s33 = smul.addr %s32, 8
    %s34 = scalar_lea.vmem %s1, %s33
    %s35 = sadd.s32 0, 0
    %p36 = scmp.lt.s32.totalorder %s35, 0
    %s37 = scalar_select %p36, %s35, 0
    %s38 = scalar_lea.vmem %s0, %s37
    %s39 = sadd.s32 0, 0
    %s40 = sadd.s32 0, 0
    %s41 = smul.u32 16, %s40
    %p42 = scmp.lt.s32.totalorder %s41, 15
    %s43 = scalar_select %p42, %s41, 15
    %s44 = smul.addr %s43, 8
    %s45 = scalar_lea.vmem %s1, %s44
    %s46 = sadd.s32 0, 0
    %s47 = smul.u32 16, %s46
    %p48 = scmp.eq.s32.totalorder 0, 0
    // Predicated region
    $region10: #{tpu_custom_call.1} parent=1 // pred_check
      %p49 = pneg %p48
    $region11: #{tpu_custom_call.1} parent=1 // pred_check_branch
      %51 = sbr.rel (%p49) target = $region13
    $region12: #{tpu_custom_call.1} parent=1 // pred_region
      %vm52 = vcmask 257024
      %53 = vst.msk [vmem:[#allocation2] sm:$0xf] %vm52, 0.0
    $region13: #{tpu_custom_call.1} parent=1 // pred_fallthru
      _
    %v54 = vld [vmem:[%s38] sm:$0x1]
    %v55 = vlaneseq
    %v56 = vshrl.u32 %v55, 7
    %v57 = vlaneseq
    %v58 = vshrl.u32 %v57, 7
    %v59 = vsub.s32 0, %v58
    %v60 = vrot.slane %v54, %v59
    %vm61 = vcmp.eq.s32.totalorder %v56, %v60
    %v62 = vsel %vm61, 1, 0
    %v63 = vcvt.s32.f32 %v62
    %v64 = vld [vmem:[#allocation2] sm:$0xf]
    %v65 = vld [vmem:[%s45] sm:$0xff]
    %v66 = vld [vmem:[%s45 + $0x8] sm:$0xff]
    %v67 = vld [vmem:[%s45 + $0x10] sm:$0xff]
    %v68 = vld [vmem:[%s45 + $0x18] sm:$0xff]
    %v69 = vld [vmem:[%s45 + $0x20] sm:$0xff]
    %v70 = vld [vmem:[%s45 + $0x28] sm:$0xff]
    %v71 = vld [vmem:[%s45 + $0x30] sm:$0xff]
    %v72 = vld [vmem:[%s45 + $0x38] sm:$0xff]
    %v73 = vld [vmem:[%s45 + $0x40] sm:$0xff]
    %v74 = vld [vmem:[%s45 + $0x48] sm:$0xff]
    %v75 = vld [vmem:[%s45 + $0x50] sm:$0xff]
    %v76 = vld [vmem:[%s45 + $0x58] sm:$0xff]
    %v77 = vld [vmem:[%s45 + $0x60] sm:$0xff]
    %v78 = vld [vmem:[%s45 + $0x68] sm:$0xff]
    %v79 = vld [vmem:[%s45 + $0x70] sm:$0xff]
    %v80 = vld [vmem:[%s45 + $0x78] sm:$0xff]
    %81 = vmatprep.subr.mxu0 0.0
    %82 = vmatpush1.msra.mxu0 %v80
    %83 = vmatprep.subr.mxu0 0.0
    %84 = vmatpush1.msra.mxu0 %v79
    %85 = vmatprep.subr.mxu0 0.0
    %86 = vmatpush1.msra.mxu0 %v78
    %87 = vmatprep.subr.mxu0 0.0
    %88 = vmatpush1.msra.mxu0 %v77
    %89 = vmatprep.subr.mxu0 0.0
    %90 = vmatpush1.msra.mxu0 %v76
    %91 = vmatprep.subr.mxu0 0.0
    %92 = vmatpush1.msra.mxu0 %v75
    %93 = vmatprep.subr.mxu0 0.0
    %94 = vmatpush1.msra.mxu0 %v74
    %95 = vmatprep.subr.mxu0 0.0
    %96 = vmatpush1.msra.mxu0 %v73
    %97 = vmatprep.subr.mxu0 0.0
    %98 = vmatpush1.msra.mxu0 %v72
    %99 = vmatprep.subr.mxu0 0.0
    %100 = vmatpush1.msra.mxu0 %v71
    %101 = vmatprep.subr.mxu0 0.0
    %102 = vmatpush1.msra.mxu0 %v70
    %103 = vmatprep.subr.mxu0 0.0
    %104 = vmatpush1.msra.mxu0 %v69
    %105 = vmatprep.subr.mxu0 0.0
    %106 = vmatpush1.msra.mxu0 %v68
    %107 = vmatprep.subr.mxu0 0.0
    %108 = vmatpush1.msra.mxu0 %v67
    %109 = vmatprep.subr.mxu0 0.0
    %110 = vmatpush1.msra.mxu0 %v66
    %111 = vmatprep.subr.mxu0 0.0
    %112 = vmatpush1.msra.mxu0 %v65
    %113 = vmatprep.subr.mxu0 0.0
    %114 = vmatpush2.msra.mxu0 0.0
    %115 = vmatprep.subr.mxu0 0.0
    %116 = vmatpush2.msra.mxu0 0.0
    %117 = vmatprep.subr.mxu0 0.0
    %118 = vmatpush2.msra.mxu0 0.0
    %119 = vmatprep.subr.mxu0 0.0
    %120 = vmatpush2.msra.mxu0 0.0
    %121 = vmatprep.subr.mxu0 0.0
    %122 = vmatpush2.msra.mxu0 0.0
    %123 = vmatprep.subr.mxu0 0.0
    %124 = vmatpush2.msra.mxu0 0.0
    %125 = vmatprep.subr.mxu0 0.0
    %126 = vmatpush2.msra.mxu0 0.0
    %127 = vmatprep.subr.mxu0 0.0
    %128 = vmatpush2.msra.mxu0 0.0
    %129 = vmatprep.subr.mxu0 0.0
    %130 = vmatpush2.msra.mxu0 0.0
    %131 = vmatprep.subr.mxu0 0.0
    %132 = vmatpush2.msra.mxu0 0.0
    %133 = vmatprep.subr.mxu0 0.0
    %134 = vmatpush2.msra.mxu0 0.0
    %135 = vmatprep.subr.mxu0 0.0
    %136 = vmatpush2.msra.mxu0 0.0
    %137 = vmatprep.subr.mxu0 0.0
    %138 = vmatpush2.msra.mxu0 0.0
    %139 = vmatprep.subr.mxu0 0.0
    %140 = vmatpush2.msra.mxu0 0.0
    %141 = vmatprep.subr.mxu0 0.0
    %142 = vmatpush2.msra.mxu0 0.0
    %143 = vmatprep.subr.mxu0 0.0
    %144 = vmatpush2.msra.mxu0 0.0
    %145 = vmatprep.mubr.f32.mxu0 0.0
    %146 = vmatmul.mubr.f32.gmra.mxu0 %v63
    %v147 = vpop.f32.mrf.mxu0
    %v148 = vadd.f32 0.0, %v147
    %v149 = vpop.f32.mrf.mxu0
    %150 = vdwg.mxu0
    %v151 = vadd.f32 %v64, %v148
    %vm152 = vcmask 257024
    %153 = vst.msk [vmem:[#allocation2] sm:$0xf] %vm152, %v151
    // Predicated region
    $region14: #{tpu_custom_call.1} parent=1 // pred_check
      %p154 = pneg %p48
    $region15: #{tpu_custom_call.1} parent=1 // pred_check_branch
      %156 = sbr.rel (%p154) target = $region17
    $region16: #{tpu_custom_call.1} parent=1 // pred_region
      %v157 = vld [vmem:[#allocation2] sm:$0xf]
      %158 = vst.msk [vmem:[#allocation3] sm:$0xf] %vm152, %v157
    $region17: #{tpu_custom_call.1} parent=1 // pred_fallthru
      _
    // Predicated region
    $region18: #{tpu_custom_call.1} parent=1 // pred_check
      _
    $region19: #{tpu_custom_call.1} parent=1 // pred_check_branch
      %160 = sbr.rel (0) target = $region21
    $region20: #{tpu_custom_call.1} parent=1 // pred_region
      %s162 = ssub.s32 64, 64
      %163 = vsyncadd [#allocation4], %s162
      %s165 = sshll.u32 [#allocation3], 4
      %s166 = int_to_ptr.vmem [resolvable:$true] %s165
      %168 = dma.vmem_to_hbm [thread:$0]  %s166, 64, %s2, [#allocation4]
    $region21: #{tpu_custom_call.1} parent=1 // pred_fallthru
      _
    // Predicated region
    $region22: #{tpu_custom_call.1} parent=1 // pred_check
      _
    $region23: #{tpu_custom_call.1} parent=1 // pred_check_branch
      %170 = sbr.rel (0) target = $region25
    $region24: #{tpu_custom_call.1} parent=1 // pred_region
      %171 = dma.done [#allocation4], 64
    $region25: #{tpu_custom_call.1} parent=1 // pred_fallthru
      _
    %172 = vsyncpa [#allocation4], 1

</llo_original>
